<compile_context>
chip_gen: v7x
topology: tpu7x:2x2x1
jax: 0.10.0
libtpu: 0.0.40
codegen_flags: <defaults>
</compile_context>

<pallas_src>
import jax
import jax.numpy as jnp
from jax import lax
from jax.experimental import pallas as pl
from jax.experimental.pallas import tpu as pltpu


def _build_prompt_kernel(off_ref, patch_ref, prompt_ref):
    """Place one channel's (P, P) patch at (xo, yo) inside a zero (H, W) plane.

    off_ref   : SMEM int32[2]        (row_offset, col_offset), scalar-prefetched
    patch_ref : VMEM f32[1, 1, P, P] patch plane for this channel
    prompt_ref: VMEM f32[1, H, W]    prompt plane for this channel
    """
    H, W = prompt_ref.shape[1], prompt_ref.shape[2]
    P = patch_ref.shape[2]
    xo = off_ref[0]
    yo = off_ref[1]

    # shifted[i, j] = patch[i - xo, j - yo] inside the window, 0 elsewhere,
    # realized as row_shift @ patch @ col_shift with exact one-hot selectors.
    # This now runs once per channel (NOT per batch element), so the tiny-K
    # MXU matmuls are negligible; they are kept because they lower robustly
    # for arbitrary H, W, P and dynamic offsets.
    # TODO(synk): a dynamic pltpu.roll of the zero-padded patch would move
    # this onto the idle XLU, but sub-128-lane dynamic rotates are riskier to
    # lower; irrelevant for perf now that it is off the hot loop.
    ri = lax.broadcasted_iota(jnp.int32, (H, P), 0)
    rk = lax.broadcasted_iota(jnp.int32, (H, P), 1)
    row_shift = (ri == rk + xo).astype(jnp.float32)           # (H, P)

    ck = lax.broadcasted_iota(jnp.int32, (P, W), 0)
    cj = lax.broadcasted_iota(jnp.int32, (P, W), 1)
    col_shift = (ck + yo == cj).astype(jnp.float32)           # (P, W)

    patch = patch_ref[0, 0].astype(jnp.float32)               # (P, P)
    shifted = jnp.dot(
        jnp.dot(row_shift, patch, preferred_element_type=jnp.float32),
        col_shift,
        preferred_element_type=jnp.float32,
    )                                                         # (H, W)
    prompt_ref[...] = shifted[None].astype(prompt_ref.dtype)


def _add_prompt_kernel(x_ref, prompt_ref, o_ref):
    """o = x + prompt (prompt broadcast over the batch-block dim).

    x_ref/o_ref: (1, C, H*W); prompt_ref: (C, H*W). Pure vld/vadd/vst stream.
    """
    o_ref[...] = x_ref[...] + prompt_ref[...][None]


def random_patch_prompter(x, patch, offsets):
    """x: (B, 3, H, W) f32, patch: (1, 3, P, P) f32, offsets: (2,) int32."""
    B, C, H, W = x.shape
    P = patch.shape[2]
    HW = H * W

    # ---- Pass 1: build the (C, H, W) prompt once (batch-independent). ----
    prompt = pl.pallas_call(
        _build_prompt_kernel,
        out_shape=jax.ShapeDtypeStruct((C, H, W), x.dtype),
        grid_spec=pltpu.PrefetchScalarGridSpec(
            num_scalar_prefetch=1,
            grid=(C,),
            in_specs=[pl.BlockSpec((1, 1, P, P), lambda c, off: (0, c, 0, 0))],
            out_specs=pl.BlockSpec((1, H, W), lambda c, off: (c, 0, 0)),
        ),
        compiler_params=pltpu.CompilerParams(
            dimension_semantics=("arbitrary",)),
    )(offsets, patch)

    # ---- Pass 2: lane-dense broadcast add over the batch. ----
    x_flat = x.reshape(B, C, HW)        # free reshape; lane dim = H*W = 256
    prompt_flat = prompt.reshape(C, HW)

    out_flat = pl.pallas_call(
        _add_prompt_kernel,
        out_shape=jax.ShapeDtypeStruct((B, C, HW), x.dtype),
        grid=(B,),
        in_specs=[
            pl.BlockSpec((1, C, HW), lambda b: (b, 0, 0)),  # one image/step
            pl.BlockSpec((C, HW), lambda b: (0, 0)),        # prompt: resident
        ],
        out_specs=pl.BlockSpec((1, C, HW), lambda b: (b, 0, 0)),
        input_output_aliases={0: 0},    # donate x's buffer to the output
        compiler_params=pltpu.CompilerParams(
            dimension_semantics=("parallel",)),
    )(x_flat, prompt_flat)

    return out_flat.reshape(B, C, H, W)


if __name__ == "__main__":
    # Module config (small, consistent with the forward pass).
    image_size = 16   # args.image_size
    prompt_size = 4   # args.prompt_size
    batch = 2
    channels = 3      # hard-coded 3 in the module

    key = jax.random.PRNGKey(0)
    k_x, k_patch, k_off = jax.random.split(key, 3)

    # Deterministic "parameter" init (identity=False -> randn).
    patch = jax.random.normal(
        k_patch, (1, channels, prompt_size, prompt_size), dtype=jnp.float32
    )
    x = jax.random.normal(
        k_x, (batch, channels, image_size, image_size), dtype=jnp.float32
    )

    # PyTorch draws np.random.choice(isize - psize) on the host each forward;
    # here the offsets are drawn deterministically and passed to the kernel.
    offsets = jax.random.randint(
        k_off, (2,), 0, image_size - prompt_size, dtype=jnp.int32
    )

    # Pure-JAX reference (computed before the kernel call).
    xo, yo = int(offsets[0]), int(offsets[1])
    prompt_full = jnp.zeros((1, channels, image_size, image_size), jnp.float32)
    prompt_full = prompt_full.at[
        :, :, xo:xo + prompt_size, yo:yo + prompt_size
    ].set(patch)
    ref = x + prompt_full

    out = jax.jit(random_patch_prompter)(x, patch, offsets)
    out = jax.block_until_ready(out)

    assert out.shape == x.shape
    assert jnp.allclose(out, ref, atol=1e-6), "mismatch vs reference"
    print("KERNEL_OK")
</pallas_src>

<mosaic_0001>
module attributes {stable_mosaic.version = 11 : i64} {
  func.func @_add_prompt_kernel(%arg0: i32, %arg1: memref<1x3x256xf32, #tpu.memory_space<vmem>>, %arg2: memref<3x256xf32, #tpu.memory_space<vmem>>, %arg3: memref<1x3x256xf32, #tpu.memory_space<vmem>>) attributes {dimension_semantics = [#tpu.dimension_semantics<parallel>], iteration_bounds = array<i64: 2>, scalar_prefetch = 0 : i64, scratch_operands = 0 : i64, tpu.core_type = #tpu.core_type<tc>, window_params = [{transform_indices = @transform_0, window_bounds = array<i64: 1, 3, 256>}, {pipeline_mode = #tpu.pipeline_mode<synchronous>, transform_indices = @transform_1, window_bounds = array<i64: 3, 256>}, {transform_indices = @transform_2, window_bounds = array<i64: 1, 3, 256>}]} {
    %c0 = arith.constant 0 : index
    %c0_0 = arith.constant 0 : index
    %c0_1 = arith.constant 0 : index
    %0 = vector.load %arg1[%c0, %c0_0, %c0_1] : memref<1x3x256xf32, #tpu.memory_space<vmem>>, vector<1x3x256xf32>
    %c0_2 = arith.constant 0 : index
    %c0_3 = arith.constant 0 : index
    %1 = vector.load %arg2[%c0_2, %c0_3] : memref<3x256xf32, #tpu.memory_space<vmem>>, vector<3x256xf32>
    %2 = vector.shape_cast %1 : vector<3x256xf32> to vector<1x3x256xf32>
    %3 = arith.addf %0, %2 : vector<1x3x256xf32>
    %c0_4 = arith.constant 0 : index
    %c0_5 = arith.constant 0 : index
    %c0_6 = arith.constant 0 : index
    %4 = vector.load %arg3[%c0_4, %c0_5, %c0_6] : memref<1x3x256xf32, #tpu.memory_space<vmem>>, vector<1x3x256xf32>
    tpu.vector_store %arg3[%c0_4, %c0_5, %c0_6], %3 {strides = array<i32>} : memref<1x3x256xf32, #tpu.memory_space<vmem>>, vector<1x3x256xf32>,
    return
  }
  func.func @transform_0(%arg0: i32) -> (i32, i32, i32) {
    %c0_i32 = arith.constant 0 : i32
    %c0_i32_0 = arith.constant 0 : i32
    %c0_i32_1 = arith.constant 0 : i32
    return %arg0, %c0_i32, %c0_i32_0 : i32, i32, i32
  }
  func.func @transform_1(%arg0: i32) -> (i32, i32) {
    %c0_i32 = arith.constant 0 : i32
    %c0_i32_0 = arith.constant 0 : i32
    %c0_i32_1 = arith.constant 0 : i32
    return %c0_i32, %c0_i32_0 : i32, i32
  }
  func.func @transform_2(%arg0: i32) -> (i32, i32, i32) {
    %c0_i32 = arith.constant 0 : i32
    %c0_i32_0 = arith.constant 0 : i32
    %c0_i32_1 = arith.constant 0 : i32
    return %arg0, %c0_i32, %c0_i32_0 : i32, i32, i32
  }
}

module attributes {stable_mosaic.version = 11 : i64} {
  func.func @_build_prompt_kernel(%arg0: i32, %arg1: memref<2xi32, #tpu.memory_space<smem>>, %arg2: memref<1x1x4x4xf32, #tpu.memory_space<vmem>>, %arg3: memref<1x16x16xf32, #tpu.memory_space<vmem>>) attributes {dimension_semantics = [#tpu.dimension_semantics<arbitrary>], iteration_bounds = array<i64: 3>, scalar_prefetch = 1 : i64, scratch_operands = 0 : i64, tpu.core_type = #tpu.core_type<tc>, window_params = [{transform_indices = @transform_0, window_bounds = array<i64: 1, 1, 4, 4>}, {transform_indices = @transform_1, window_bounds = array<i64: 1, 16, 16>}]} {
    %c0 = arith.constant 0 : index
    %0 = memref.load %arg1[%c0] : memref<2xi32, #tpu.memory_space<smem>>
    %c1 = arith.constant 1 : index
    %1 = memref.load %arg1[%c1] : memref<2xi32, #tpu.memory_space<smem>>
    %2 = tpu.iota {dimensions = array<i32: 0>} : vector<16x4xi32>
    %3 = tpu.iota {dimensions = array<i32: 1>} : vector<16x4xi32>
    %4 = vector.broadcast %0 : i32 to vector<16x4xi32>
    %5 = arith.addi %3, %4 : vector<16x4xi32>
    %6 = arith.cmpi eq, %2, %5 : vector<16x4xi32>
    %7 = arith.extui %6 : vector<16x4xi1> to vector<16x4xi32>
    %8 = arith.sitofp %7 : vector<16x4xi32> to vector<16x4xf32>
    %9 = tpu.iota {dimensions = array<i32: 0>} : vector<4x16xi32>
    %10 = tpu.iota {dimensions = array<i32: 1>} : vector<4x16xi32>
    %11 = vector.broadcast %1 : i32 to vector<4x16xi32>
    %12 = arith.addi %9, %11 : vector<4x16xi32>
    %13 = arith.cmpi eq, %12, %10 : vector<4x16xi32>
    %14 = arith.extui %13 : vector<4x16xi1> to vector<4x16xi32>
    %15 = arith.sitofp %14 : vector<4x16xi32> to vector<4x16xf32>
    %c0_0 = arith.constant 0 : index
    %c0_1 = arith.constant 0 : index
    %c0_2 = arith.constant 0 : index
    %c0_3 = arith.constant 0 : index
    %16 = vector.load %arg2[%c0_0, %c0_1, %c0_2, %c0_3] : memref<1x1x4x4xf32, #tpu.memory_space<vmem>>, vector<1x1x4x4xf32>
    %17 = vector.shape_cast %16 : vector<1x1x4x4xf32> to vector<4x4xf32>
    %cst = arith.constant dense<0.000000e+00> : vector<16x4xf32>
    %18 = tpu.matmul %8, %17, %cst {dimension_numbers = #tpu.dot_dimension_numbers<[1], [0], [0], [1], [0, 0, 1, 1], [], []>} : vector<16x4xf32>, vector<4x4xf32>, vector<16x4xf32> -> vector<16x4xf32>
    %cst_4 = arith.constant dense<0.000000e+00> : vector<16x16xf32>
    %19 = tpu.matmul %18, %15, %cst_4 {dimension_numbers = #tpu.dot_dimension_numbers<[1], [0], [0], [1], [0, 0, 1, 1], [], []>} : vector<16x4xf32>, vector<4x16xf32>, vector<16x16xf32> -> vector<16x16xf32>
    %20 = vector.shape_cast %19 : vector<16x16xf32> to vector<1x16x16xf32>
    %c0_5 = arith.constant 0 : index
    %c0_6 = arith.constant 0 : index
    %c0_7 = arith.constant 0 : index
    %21 = vector.load %arg3[%c0_5, %c0_6, %c0_7] : memref<1x16x16xf32, #tpu.memory_space<vmem>>, vector<1x16x16xf32>
    tpu.vector_store %arg3[%c0_5, %c0_6, %c0_7], %20 {strides = array<i32>} : memref<1x16x16xf32, #tpu.memory_space<vmem>>, vector<1x16x16xf32>,
    return
  }
  func.func @transform_0(%arg0: i32, %arg1: memref<2xi32, #tpu.memory_space<smem>>) -> (i32, i32, i32, i32) {
    %c0_i32 = arith.constant 0 : i32
    %c0_i32_0 = arith.constant 0 : i32
    %c0_i32_1 = arith.constant 0 : i32
    %c0_i32_2 = arith.constant 0 : i32
    return %c0_i32, %arg0, %c0_i32_0, %c0_i32_1 : i32, i32, i32, i32
  }
  func.func @transform_1(%arg0: i32, %arg1: memref<2xi32, #tpu.memory_space<smem>>) -> (i32, i32, i32) {
    %c0_i32 = arith.constant 0 : i32
    %c0_i32_0 = arith.constant 0 : i32
    %c0_i32_1 = arith.constant 0 : i32
    return %arg0, %c0_i32, %c0_i32_0 : i32, i32, i32
  }
}

</mosaic_0001>

<llo_original>
// kernel: random_patch_prompter.3
$region0: #{random_patch_prompter.3}
  #allocation0 [shape = 'u32[]', space=smem, size = 0x4, offset = 0x4, fixed_abs, tag = 'smem constant byte address 0x4 - core index']
  #allocation1 [shape = 'u32[144,128]{1,0:T(1,128)}', space=vmem, size = 0x12000, scoped, tag = 'internal scratch']
  %s0 = inlined_call_operand.vmem [shape: f32[2,3,256], index: 0, kind: input, shape index: {}, may-alias: {0,2}]
  %s1 = inlined_call_operand.vmem [shape: f32[3,256], index: 1, kind: input, shape index: {}]
  %s2 = inlined_call_operand.vmem [shape: f32[2,3,256], index: 2, kind: output, shape index: {}, may-alias: {0,2}]
  %s3 = sld [smem:[#allocation0]]
  $region41: #{random_patch_prompter.3} parent=0
    _
  %s5 = ssub.s32 1, %s3
  %s6 = scalar_select 0, %s5, %s3
  loop: start=0, step=1, limit=4
  $region2: #{random_patch_prompter.3} parent=0 // loop_pre_header
    _
  $region3: #{random_patch_prompter.3} parent=0 // loop_header
    %s8 = sphi 0, %s12
    %p9 = scmp.ge.s32.totalorder %s8, 4
    %s18 = sphi 0, %s20
    %s21 = sphi 0, %s18
    %s22 = sphi 0, %s21
    %s38 = sphi 0, %s22
    %s42 = sphi 0, %s42
    %s44 = sphi 0, %s42
    %s45 = sphi 0, %s44
    %s59 = sphi 0, %s45
    %s65 = sphi 0, %s67
    %s68 = sphi 0, %s65
    %s69 = sphi 0, %s68
    %s85 = sphi 0, %s69
  $region4: #{random_patch_prompter.3} parent=0 // loop_header_branch
    %11 = sbr.rel (%p9) target = $region8
  $region5: #{random_patch_prompter.3} parent=0 // loop_body
    %s13 = ssub.s32 %s8, 1
    %s14 = ssub.s32 %s8, 2
    %s15 = sadd.s32 %s8, 1
    %s16 = ssub.s32 %s8, %s15
    %p17 = scmp.eq.s32.totalorder %s16, 0
    %s19 = sadd.s32 %s18, 1
    %s20 = scalar_select %p17, %s18, %s19
    %p23 = pneg %p17
    %p24 = scmp.eq.s32.totalorder %s8, 1
    %p25 = por %p23, %p24
    %p26 = scmp.ne.s32.totalorder %s18, %s21
    %p27 = scmp.eq.s32.totalorder %s8, 0
    %p28 = por %p26, %p27
    %p29 = scmp.ne.s32.totalorder %s18, %s21
    %p30 = scmp.eq.s32.totalorder %s13, 1
    %p31 = por %p29, %p30
    %p32 = scmp.ne.s32.totalorder %s21, %s22
    %p33 = scmp.eq.s32.totalorder %s13, 0
    %p34 = por %p32, %p33
    %p35 = scmp.ne.s32.totalorder %s21, %s22
    %p36 = scmp.eq.s32.totalorder %s14, 1
    %p37 = por %p35, %p36
    %p39 = scmp.ne.s32.totalorder %s22, %s38
    %p40 = scmp.eq.s32.totalorder %s14, 0
    %p41 = por %p39, %p40
    %s43 = sadd.s32 %s42, 1
    %p46 = scmp.eq.s32.totalorder %s8, 1
    %p47 = scmp.ne.s32.totalorder %s42, %s44
    %p48 = scmp.eq.s32.totalorder %s8, 0
    %p49 = por %p47, %p48
    %p50 = scmp.ne.s32.totalorder %s42, %s44
    %p51 = scmp.eq.s32.totalorder %s13, 1
    %p52 = por %p50, %p51
    %p53 = scmp.ne.s32.totalorder %s44, %s45
    %p54 = scmp.eq.s32.totalorder %s13, 0
    %p55 = por %p53, %p54
    %p56 = scmp.ne.s32.totalorder %s44, %s45
    %p57 = scmp.eq.s32.totalorder %s14, 1
    %p58 = por %p56, %p57
    %p60 = scmp.ne.s32.totalorder %s45, %s59
    %p61 = scmp.eq.s32.totalorder %s14, 0
    %p62 = por %p60, %p61
    %s63 = ssub.s32 %s8, %s15
    %p64 = scmp.eq.s32.totalorder %s63, 0
    %s66 = sadd.s32 %s65, 1
    %s67 = scalar_select %p64, %s65, %s66
    %p70 = pneg %p64
    %p71 = scmp.eq.s32.totalorder %s8, 1
    %p72 = por %p70, %p71
    %p73 = scmp.ne.s32.totalorder %s65, %s68
    %p74 = scmp.eq.s32.totalorder %s8, 0
    %p75 = por %p73, %p74
    %p76 = scmp.ne.s32.totalorder %s65, %s68
    %p77 = scmp.eq.s32.totalorder %s13, 1
    %p78 = por %p76, %p77
    %p79 = scmp.ne.s32.totalorder %s68, %s69
    %p80 = scmp.eq.s32.totalorder %s13, 0
    %p81 = por %p79, %p80
    %p82 = scmp.ne.s32.totalorder %s68, %s69
    %p83 = scmp.eq.s32.totalorder %s14, 1
    %p84 = por %p82, %p83
    %p86 = scmp.ne.s32.totalorder %s69, %s85
    %p87 = scmp.eq.s32.totalorder %s14, 0
    %p88 = por %p86, %p87
    %p89 = scmp.le.s32.totalorder 1, %s8
    %p90 = scmp.lt.s32.totalorder %s8, 3
    %p91 = pnand %p89, %p90
    %p92 = pneg %p91
    // Predicated region
    $region9: #{random_patch_prompter.3} parent=5 // pred_check
      _
    $region10: #{random_patch_prompter.3} parent=5 // pred_check_branch
      %94 = sbr.rel (%p91) target = $region12
    $region11: #{random_patch_prompter.3} parent=5 // pred_region
      %s95 = ssub.s32 %s8, 1
      // Predicated region
      $region13: #{random_patch_prompter.3} parent=11 // pred_check
        %p96 = pneg %p55
      $region14: #{random_patch_prompter.3} parent=11 // pred_check_branch
        %98 = sbr.rel (%p96) target = $region16
      $region15: #{random_patch_prompter.3} parent=11 // pred_region
        _
      $region16: #{random_patch_prompter.3} parent=11 // pred_fallthru
        _
    $region12: #{random_patch_prompter.3} parent=5 // pred_fallthru
      _
    %p99 = scmp.lt.s32.totalorder %s8, 2
    // Predicated region
    $region17: #{random_patch_prompter.3} parent=5 // pred_check
      %p100 = pneg %p99
    $region18: #{random_patch_prompter.3} parent=5 // pred_check_branch
      %102 = sbr.rel (%p100) target = $region20
    $region19: #{random_patch_prompter.3} parent=5 // pred_region
      // Predicated region
      $region21: #{random_patch_prompter.3} parent=19 // pred_check
        %p103 = pneg %p28
      $region22: #{random_patch_prompter.3} parent=19 // pred_check_branch
        %105 = sbr.rel (%p103) target = $region24
      $region23: #{random_patch_prompter.3} parent=19 // pred_region
        %p106 = scmp.lt.s32.totalorder %s8, 1
        %s107 = scalar_select %p106, %s8, 1
        %s108 = smul.addr %s107, 2
        %s109 = smul.addr %s108, 4
        %s110 = scalar_lea.vmem %s0, %s109
      $region24: #{random_patch_prompter.3} parent=19 // pred_fallthru
        _
    $region20: #{random_patch_prompter.3} parent=5 // pred_fallthru
      _
    %p111 = scmp.le.s32.totalorder 1, %s8
    %p112 = scmp.lt.s32.totalorder %s8, 3
    %p113 = pnand %p111, %p112
    %p114 = pneg %p113
    // Predicated region
    $region25: #{random_patch_prompter.3} parent=5 // pred_check
      _
    $region26: #{random_patch_prompter.3} parent=5 // pred_check_branch
      %116 = sbr.rel (%p113) target = $region28
    $region27: #{random_patch_prompter.3} parent=5 // pred_region
      %s117 = ssub.s32 %s8, 1
      %p118 = scmp.lt.s32.totalorder %s13, 1
      %s119 = scalar_select %p118, %s13, 1
      %s120 = smul.addr %s119, 2
      %s121 = smul.addr %s120, 4
      %s122 = scalar_lea.vmem %s0, %s121
      %p123 = pneg %p34
      %p124 = pneg %p31
      %p125 = pneg %p55
      %p126 = pneg %p52
      %p127 = pneg %p81
      %p128 = pneg %p78
      %p129 = scmp.lt.s32.totalorder %s13, 1
      %s130 = scalar_select %p129, %s13, 1
      %s131 = smul.addr %s130, 2
      %s132 = smul.addr %s131, 4
      %s133 = scalar_lea.vmem %s2, %s132
      %p134 = scmp.lt.s32.totalorder %s13, 1
      %s135 = scalar_select %p134, %s13, 1
      %s136 = smul.addr %s135, 2
      %s137 = smul.addr %s136, 4
      %s138 = scalar_lea.vmem %s0, %s137
      %p139 = scmp.lt.s32.totalorder %s13, 1
      %s140 = scalar_select %p139, %s13, 1
      %s141 = smul.addr %s140, 2
      %s142 = smul.addr %s141, 4
      %s143 = scalar_lea.vmem %s2, %s142
      %v144 = vld [vmem:[%s138] sm:$0x77]
      %v145 = vld [vmem:[%s1] sm:$0x77]
      %v146 = vadd.f32 %v144, %v145
      %147 = vst [vmem:[%s143] sm:$0x77] %v146
      %p148 = scmp.lt.s32.totalorder %s13, 1
      %s149 = scalar_select %p148, %s13, 1
      %s150 = smul.addr %s149, 2
      %s151 = smul.addr %s150, 4
      %s152 = scalar_lea.vmem %s2, %s151
      // Predicated region
      $region29: #{random_patch_prompter.3} parent=27 // pred_check
        %p153 = pneg %p78
      $region30: #{random_patch_prompter.3} parent=27 // pred_check_branch
        %155 = sbr.rel (%p153) target = $region32
      $region31: #{random_patch_prompter.3} parent=27 // pred_region
        _
      $region32: #{random_patch_prompter.3} parent=27 // pred_fallthru
        _
    $region28: #{random_patch_prompter.3} parent=5 // pred_fallthru
      _
    %p156 = scmp.le.s32.totalorder 2, %s8
    // Predicated region
    $region33: #{random_patch_prompter.3} parent=5 // pred_check
      %p157 = pneg %p156
    $region34: #{random_patch_prompter.3} parent=5 // pred_check_branch
      %159 = sbr.rel (%p157) target = $region36
    $region35: #{random_patch_prompter.3} parent=5 // pred_region
      %s160 = ssub.s32 %s8, 2
      // Predicated region
      $region37: #{random_patch_prompter.3} parent=35 // pred_check
        %p161 = pneg %p84
      $region38: #{random_patch_prompter.3} parent=35 // pred_check_branch
        %163 = sbr.rel (%p161) target = $region40
      $region39: #{random_patch_prompter.3} parent=35 // pred_region
        %p164 = scmp.lt.s32.totalorder %s14, 1
        %s165 = scalar_select %p164, %s14, 1
        %s166 = smul.addr %s165, 2
        %s167 = smul.addr %s166, 4
        %s168 = scalar_lea.vmem %s2, %s167
      $region40: #{random_patch_prompter.3} parent=35 // pred_fallthru
        _
    $region36: #{random_patch_prompter.3} parent=5 // pred_fallthru
      _
  $region6: #{random_patch_prompter.3} parent=0 // loop_footer
    %s12 = sadd.s32 1, %s8
  $region7: #{random_patch_prompter.3} parent=0 // loop_footer_branch
    %7 = sbr.rel target = $region3
  $region8: #{random_patch_prompter.3} parent=0 // loop_exit
    _

// kernel: random_patch_prompter.2
$region0: #{random_patch_prompter.2}
  #allocation0 [shape = 'u32[]', space=smem, size = 0x4, offset = 0x4, fixed_abs, tag = 'smem constant byte address 0x4 - core index']
  #allocation1 [shape = 'u32[144,128]{1,0:T(1,128)}', space=vmem, size = 0x12000, scoped, tag = 'internal scratch']
  #allocation2 [shape = 's32[1]{0}', space=sflag, size = 0x4, scoped, tag = 'scoped memory for random_patch_prompter.2']
  #allocation3 [shape = 'u8[512]{0}', space=smem, size = 0x200, scoped, tag = 'prefetched SMEM operand 0']
  %s0 = inlined_call_operand.vmem [shape: s32[2], index: 0, kind: input, shape index: {}]
  %s1 = inlined_call_operand.vmem [shape: f32[1,3,4,4], index: 1, kind: input, shape index: {}]
  %s2 = inlined_call_operand.vmem [shape: f32[3,16,16], index: 2, kind: output, shape index: {}]
  %s3 = sld [smem:[#allocation0]]
  $region37: #{random_patch_prompter.2} parent=0
    _
  %s5 = ssub.s32 1, %s3
  %s6 = scalar_select 0, %s5, %s3
  %s7 = sshll.u32 %s0, 4
  %s8 = int_to_ptr.vmem [resolvable:$true] %s7
  %10 = dma.vmem_to_smem %s8, 16, [#allocation3], [#allocation2]
  %11 = dma.done [#allocation2], 16
  %12 = sfence
  loop: start=0, step=1, limit=5
  $region2: #{random_patch_prompter.2} parent=0 // loop_pre_header
    _
  $region3: #{random_patch_prompter.2} parent=0 // loop_header
    %s14 = sphi 0, %s18
    %p15 = scmp.ge.s32.totalorder %s14, 5
    %s24 = sphi 0, %s26
    %s27 = sphi 0, %s24
    %s28 = sphi 0, %s27
    %s44 = sphi 0, %s28
    %s50 = sphi 0, %s52
    %s53 = sphi 0, %s50
    %s54 = sphi 0, %s53
    %s70 = sphi 0, %s54
  $region4: #{random_patch_prompter.2} parent=0 // loop_header_branch
    %17 = sbr.rel (%p15) target = $region8
  $region5: #{random_patch_prompter.2} parent=0 // loop_body
    %s19 = ssub.s32 %s14, 1
    %s20 = ssub.s32 %s14, 2
    %s21 = sadd.s32 %s14, 1
    %s22 = ssub.s32 %s14, %s21
    %p23 = scmp.eq.s32.totalorder %s22, 0
    %s25 = sadd.s32 %s24, 1
    %s26 = scalar_select %p23, %s24, %s25
    %p29 = pneg %p23
    %p30 = scmp.eq.s32.totalorder %s14, 2
    %p31 = por %p29, %p30
    %p32 = scmp.ne.s32.totalorder %s24, %s27
    %p33 = scmp.eq.s32.totalorder %s14, 0
    %p34 = por %p32, %p33
    %p35 = scmp.ne.s32.totalorder %s24, %s27
    %p36 = scmp.eq.s32.totalorder %s19, 2
    %p37 = por %p35, %p36
    %p38 = scmp.ne.s32.totalorder %s27, %s28
    %p39 = scmp.eq.s32.totalorder %s19, 0
    %p40 = por %p38, %p39
    %p41 = scmp.ne.s32.totalorder %s27, %s28
    %p42 = scmp.eq.s32.totalorder %s20, 2
    %p43 = por %p41, %p42
    %p45 = scmp.ne.s32.totalorder %s28, %s44
    %p46 = scmp.eq.s32.totalorder %s20, 0
    %p47 = por %p45, %p46
    %s48 = ssub.s32 %s14, %s21
    %p49 = scmp.eq.s32.totalorder %s48, 0
    %s51 = sadd.s32 %s50, 1
    %s52 = scalar_select %p49, %s50, %s51
    %p55 = pneg %p49
    %p56 = scmp.eq.s32.totalorder %s14, 2
    %p57 = por %p55, %p56
    %p58 = scmp.ne.s32.totalorder %s50, %s53
    %p59 = scmp.eq.s32.totalorder %s14, 0
    %p60 = por %p58, %p59
    %p61 = scmp.ne.s32.totalorder %s50, %s53
    %p62 = scmp.eq.s32.totalorder %s19, 2
    %p63 = por %p61, %p62
    %p64 = scmp.ne.s32.totalorder %s53, %s54
    %p65 = scmp.eq.s32.totalorder %s19, 0
    %p66 = por %p64, %p65
    %p67 = scmp.ne.s32.totalorder %s53, %s54
    %p68 = scmp.eq.s32.totalorder %s20, 2
    %p69 = por %p67, %p68
    %p71 = scmp.ne.s32.totalorder %s54, %s70
    %p72 = scmp.eq.s32.totalorder %s20, 0
    %p73 = por %p71, %p72
    %p74 = scmp.le.s32.totalorder 1, %s14
    %p75 = scmp.lt.s32.totalorder %s14, 4
    %p76 = pnand %p74, %p75
    %p77 = pneg %p76
    // Predicated region
    $region9: #{random_patch_prompter.2} parent=5 // pred_check
      _
    $region10: #{random_patch_prompter.2} parent=5 // pred_check_branch
      %79 = sbr.rel (%p76) target = $region12
    $region11: #{random_patch_prompter.2} parent=5 // pred_region
      %s80 = ssub.s32 %s14, 1
    $region12: #{random_patch_prompter.2} parent=5 // pred_fallthru
      _
    %p81 = scmp.lt.s32.totalorder %s14, 3
    // Predicated region
    $region13: #{random_patch_prompter.2} parent=5 // pred_check
      %p82 = pneg %p81
    $region14: #{random_patch_prompter.2} parent=5 // pred_check_branch
      %84 = sbr.rel (%p82) target = $region16
    $region15: #{random_patch_prompter.2} parent=5 // pred_region
      // Predicated region
      $region17: #{random_patch_prompter.2} parent=15 // pred_check
        %p85 = pneg %p34
      $region18: #{random_patch_prompter.2} parent=15 // pred_check_branch
        %87 = sbr.rel (%p85) target = $region20
      $region19: #{random_patch_prompter.2} parent=15 // pred_region
        %p88 = scmp.lt.s32.totalorder %s14, 2
        %s89 = scalar_select %p88, %s14, 2
        %s90 = smul.addr %s89, 4
        %s91 = scalar_lea.vmem %s1, %s90
      $region20: #{random_patch_prompter.2} parent=15 // pred_fallthru
        _
    $region16: #{random_patch_prompter.2} parent=5 // pred_fallthru
      _
    %p92 = scmp.le.s32.totalorder 1, %s14
    %p93 = scmp.lt.s32.totalorder %s14, 4
    %p94 = pnand %p92, %p93
    %p95 = pneg %p94
    // Predicated region
    $region21: #{random_patch_prompter.2} parent=5 // pred_check
      _
    $region22: #{random_patch_prompter.2} parent=5 // pred_check_branch
      %97 = sbr.rel (%p94) target = $region24
    $region23: #{random_patch_prompter.2} parent=5 // pred_region
      %s98 = ssub.s32 %s14, 1
      %p99 = scmp.lt.s32.totalorder %s19, 2
      %s100 = scalar_select %p99, %s19, 2
      %s101 = smul.addr %s100, 4
      %s102 = scalar_lea.vmem %s1, %s101
      %p103 = pneg %p40
      %p104 = pneg %p37
      %p105 = pneg %p66
      %p106 = pneg %p63
      %p107 = scmp.lt.s32.totalorder %s19, 2
      %s108 = scalar_select %p107, %s19, 2
      %s109 = smul.addr %s108, 2
      %s110 = smul.addr %s109, 8
      %s111 = scalar_lea.vmem %s2, %s110
      %p112 = scmp.lt.s32.totalorder %s19, 2
      %s113 = scalar_select %p112, %s19, 2
      %s114 = smul.addr %s113, 4
      %s115 = scalar_lea.vmem %s1, %s114
      %p116 = scmp.lt.s32.totalorder %s19, 2
      %s117 = scalar_select %p116, %s19, 2
      %s118 = smul.addr %s117, 2
      %s119 = smul.addr %s118, 8
      %s120 = scalar_lea.vmem %s2, %s119
      %s121 = sld [smem:[#allocation3]]
      %s122 = sld [smem:[#allocation3 + $0x1]]
      %v123 = vlaneseq
      %v124 = vshrl.u32 %v123, 7
      %v125 = vadd.s32 %v124, 8
      %v126 = vlaneseq
      %v127 = vand.u32 %v126, 127
      %v128 = vstv %s121
      %v129 = vadd.s32 %v127, %v128
      %vm130 = vcmp.eq.s32.totalorder %v124, %v129
      %vm131 = vcmp.eq.s32.totalorder %v125, %v129
      %v132 = vsel %vm130, 1, 0
      %v133 = vsel %vm131, 1, 0
      %v134 = vcvt.s32.f32 %v132
      %v135 = vcvt.s32.f32 %v133
      %v136 = vstv %s122
      %v137 = vadd.s32 %v124, %v136
      %vm138 = vcmp.eq.s32.totalorder %v137, %v127
      %v139 = vsel %vm138, 1, 0
      %v140 = vcvt.s32.f32 %v139
      %v141 = vld [vmem:[%s115] sm:$0xf]
      %vm142 = vcmask 31744
      %v144 = vsel %vm142, %v134, 0
      %v147 = vsel %vm142, %v135, 0
      %vm149 = vcmask 1043456
      %v151 = vsel %vm149, %v141, 0
      %153 = vmatprep.subr.mxu0 0.0
      %154 = vmatpush1.msra.mxu0 %v151
      %155 = vmatprep.subr.mxu0 0.0
      %156 = vmatpush1.msra.mxu0 0.0
      %157 = vmatprep.subr.mxu0 0.0
      %158 = vmatpush1.msra.mxu0 0.0
      %159 = vmatprep.subr.mxu0 0.0
      %160 = vmatpush1.msra.mxu0 0.0
      %161 = vmatprep.subr.mxu0 0.0
      %162 = vmatpush1.msra.mxu0 0.0
      %163 = vmatprep.subr.mxu0 0.0
      %164 = vmatpush1.msra.mxu0 0.0
      %165 = vmatprep.subr.mxu0 0.0
      %166 = vmatpush1.msra.mxu0 0.0
      %167 = vmatprep.subr.mxu0 0.0
      %168 = vmatpush1.msra.mxu0 0.0
      %169 = vmatprep.subr.mxu0 0.0
      %170 = vmatpush1.msra.mxu0 0.0
      %171 = vmatprep.subr.mxu0 0.0
      %172 = vmatpush1.msra.mxu0 0.0
      %173 = vmatprep.subr.mxu0 0.0
      %174 = vmatpush1.msra.mxu0 0.0
      %175 = vmatprep.subr.mxu0 0.0
      %176 = vmatpush1.msra.mxu0 0.0
      %177 = vmatprep.subr.mxu0 0.0
      %178 = vmatpush1.msra.mxu0 0.0
      %179 = vmatprep.subr.mxu0 0.0
      %180 = vmatpush1.msra.mxu0 0.0
      %181 = vmatprep.subr.mxu0 0.0
      %182 = vmatpush1.msra.mxu0 0.0
      %183 = vmatprep.subr.mxu0 0.0
      %184 = vmatpush1.msra.mxu0 0.0
      %185 = vmatprep.subr.mxu0 0.0
      %186 = vmatpush1.msra.mxu0 0.0
      %187 = vmatprep.subr.mxu0 0.0
      %188 = vmatpush1.msra.mxu0 0.0
      %189 = vmatprep.subr.mxu0 0.0
      %190 = vmatpush1.msra.mxu0 0.0
      %191 = vmatprep.subr.mxu0 0.0
      %192 = vmatpush1.msra.mxu0 0.0
      %193 = vmatprep.subr.mxu0 0.0
      %194 = vmatpush1.msra.mxu0 0.0
      %195 = vmatprep.subr.mxu0 0.0
      %196 = vmatpush1.msra.mxu0 0.0
      %197 = vmatprep.subr.mxu0 0.0
      %198 = vmatpush1.msra.mxu0 0.0
      %199 = vmatprep.subr.mxu0 0.0
      %200 = vmatpush1.msra.mxu0 0.0
      %201 = vmatprep.subr.mxu0 0.0
      %202 = vmatpush1.msra.mxu0 0.0
      %203 = vmatprep.subr.mxu0 0.0
      %204 = vmatpush1.msra.mxu0 0.0
      %205 = vmatprep.subr.mxu0 0.0
      %206 = vmatpush1.msra.mxu0 0.0
      %207 = vmatprep.subr.mxu0 0.0
      %208 = vmatpush1.msra.mxu0 0.0
      %209 = vmatprep.subr.mxu0 0.0
      %210 = vmatpush1.msra.mxu0 0.0
      %211 = vmatprep.subr.mxu0 0.0
      %212 = vmatpush1.msra.mxu0 0.0
      %213 = vmatprep.subr.mxu0 0.0
      %214 = vmatpush1.msra.mxu0 0.0
      %215 = vmatprep.subr.mxu0 0.0
      %216 = vmatpush1.msra.mxu0 0.0
      %217 = vmatprep.mubr.f32.mxu0 0.0
      %218 = vmatmul.mubr.f32.gmra.mrb[0].mxu0 %v144
      %v219 = vpop.f32.mrb[0].mxu0
      %v220 = vadd.f32 0.0, %v219
      %v221 = vpop.f32.mrb[0].mxu0
      %222 = vmatprep.mubr.f32.mxu0 0.0
      %223 = vmatmul.mubr.f32.gmra.mrb[0].mxu0 %v147
      %v224 = vpop.f32.mrb[0].mxu0
      %v225 = vadd.f32 0.0, %v224
      %v226 = vpop.f32.mrb[0].mxu0
      %227 = vdwg.mxu0
      %v229 = vsel %vm142, %v220, 0
      %v232 = vsel %vm142, %v225, 0
      %v235 = vsel %vm149, %v140, 0
      %237 = vmatprep.subr.mxu0 0.0
      %238 = vmatpush1.msra.mxu0 %v235
      %239 = vmatprep.subr.mxu0 0.0
      %240 = vmatpush1.msra.mxu0 0.0
      %241 = vmatprep.subr.mxu0 0.0
      %242 = vmatpush1.msra.mxu0 0.0
      %243 = vmatprep.subr.mxu0 0.0
      %244 = vmatpush1.msra.mxu0 0.0
      %245 = vmatprep.subr.mxu0 0.0
      %246 = vmatpush1.msra.mxu0 0.0
      %247 = vmatprep.subr.mxu0 0.0
      %248 = vmatpush1.msra.mxu0 0.0
      %249 = vmatprep.subr.mxu0 0.0
      %250 = vmatpush1.msra.mxu0 0.0
      %251 = vmatprep.subr.mxu0 0.0
      %252 = vmatpush1.msra.mxu0 0.0
      %253 = vmatprep.subr.mxu0 0.0
      %254 = vmatpush1.msra.mxu0 0.0
      %255 = vmatprep.subr.mxu0 0.0
      %256 = vmatpush1.msra.mxu0 0.0
      %257 = vmatprep.subr.mxu0 0.0
      %258 = vmatpush1.msra.mxu0 0.0
      %259 = vmatprep.subr.mxu0 0.0
      %260 = vmatpush1.msra.mxu0 0.0
      %261 = vmatprep.subr.mxu0 0.0
      %262 = vmatpush1.msra.mxu0 0.0
      %263 = vmatprep.subr.mxu0 0.0
      %264 = vmatpush1.msra.mxu0 0.0
      %265 = vmatprep.subr.mxu0 0.0
      %266 = vmatpush1.msra.mxu0 0.0
      %267 = vmatprep.subr.mxu0 0.0
      %268 = vmatpush1.msra.mxu0 0.0
      %269 = vmatprep.subr.mxu0 0.0
      %270 = vmatpush1.msra.mxu0 0.0
      %271 = vmatprep.subr.mxu0 0.0
      %272 = vmatpush1.msra.mxu0 0.0
      %273 = vmatprep.subr.mxu0 0.0
      %274 = vmatpush1.msra.mxu0 0.0
      %275 = vmatprep.subr.mxu0 0.0
      %276 = vmatpush1.msra.mxu0 0.0
      %277 = vmatprep.subr.mxu0 0.0
      %278 = vmatpush1.msra.mxu0 0.0
      %279 = vmatprep.subr.mxu0 0.0
      %280 = vmatpush1.msra.mxu0 0.0
      %281 = vmatprep.subr.mxu0 0.0
      %282 = vmatpush1.msra.mxu0 0.0
      %283 = vmatprep.subr.mxu0 0.0
      %284 = vmatpush1.msra.mxu0 0.0
      %285 = vmatprep.subr.mxu0 0.0
      %286 = vmatpush1.msra.mxu0 0.0
      %287 = vmatprep.subr.mxu0 0.0
      %288 = vmatpush1.msra.mxu0 0.0
      %289 = vmatprep.subr.mxu0 0.0
      %290 = vmatpush1.msra.mxu0 0.0
      %291 = vmatprep.subr.mxu0 0.0
      %292 = vmatpush1.msra.mxu0 0.0
      %293 = vmatprep.subr.mxu0 0.0
      %294 = vmatpush1.msra.mxu0 0.0
      %295 = vmatprep.subr.mxu0 0.0
      %296 = vmatpush1.msra.mxu0 0.0
      %297 = vmatprep.subr.mxu0 0.0
      %298 = vmatpush1.msra.mxu0 0.0
      %299 = vmatprep.subr.mxu0 0.0
      %300 = vmatpush1.msra.mxu0 0.0
      %301 = vmatprep.mubr.f32.mxu0 0.0
      %302 = vmatmul.mubr.f32.gmra.mrb[0].mxu0 %v229
      %v303 = vpop.f32.mrb[0].mxu0
      %v304 = vadd.f32 0.0, %v303
      %v305 = vpop.f32.mrb[0].mxu0
      %306 = vmatprep.mubr.f32.mxu0 0.0
      %307 = vmatmul.mubr.f32.gmra.mrb[0].mxu0 %v232
      %v308 = vpop.f32.mrb[0].mxu0
      %v309 = vadd.f32 0.0, %v308
      %v310 = vpop.f32.mrb[0].mxu0
      %311 = vdwg.mxu0
      %vm312 = vcmask 130048
      %313 = vst.msk [vmem:[%s120] sm:$0xff] %vm312, %v304
      %314 = vst.msk [vmem:[%s120 + $0x8] sm:$0xff] %vm312, %v309
      %p315 = scmp.lt.s32.totalorder %s19, 2
      %s316 = scalar_select %p315, %s19, 2
      %s317 = smul.addr %s316, 2
      %s318 = smul.addr %s317, 8
      %s319 = scalar_lea.vmem %s2, %s318
      // Predicated region
      $region25: #{random_patch_prompter.2} parent=23 // pred_check
        %p320 = pneg %p63
      $region26: #{random_patch_prompter.2} parent=23 // pred_check_branch
        %322 = sbr.rel (%p320) target = $region28
      $region27: #{random_patch_prompter.2} parent=23 // pred_region
        _
      $region28: #{random_patch_prompter.2} parent=23 // pred_fallthru
        _
    $region24: #{random_patch_prompter.2} parent=5 // pred_fallthru
      _
    %p323 = scmp.le.s32.totalorder 2, %s14
    // Predicated region
    $region29: #{random_patch_prompter.2} parent=5 // pred_check
      %p324 = pneg %p323
    $region30: #{random_patch_prompter.2} parent=5 // pred_check_branch
      %326 = sbr.rel (%p324) target = $region32
    $region31: #{random_patch_prompter.2} parent=5 // pred_region
      %s327 = ssub.s32 %s14, 2
      // Predicated region
      $region33: #{random_patch_prompter.2} parent=31 // pred_check
        %p328 = pneg %p69
      $region34: #{random_patch_prompter.2} parent=31 // pred_check_branch
        %330 = sbr.rel (%p328) target = $region36
      $region35: #{random_patch_prompter.2} parent=31 // pred_region
        %p331 = scmp.lt.s32.totalorder %s20, 2
        %s332 = scalar_select %p331, %s20, 2
        %s333 = smul.addr %s332, 2
        %s334 = smul.addr %s333, 8
        %s335 = scalar_lea.vmem %s2, %s334
      $region36: #{random_patch_prompter.2} parent=31 // pred_fallthru
        _
    $region32: #{random_patch_prompter.2} parent=5 // pred_fallthru
      _
  $region6: #{random_patch_prompter.2} parent=0 // loop_footer
    %s18 = sadd.s32 1, %s14
  $region7: #{random_patch_prompter.2} parent=0 // loop_footer_branch
    %13 = sbr.rel target = $region3
  $region8: #{random_patch_prompter.2} parent=0 // loop_exit
    _

</llo_original>
